<compile_context>
chip_gen: v7x
topology: tpu7x:2x2x1
jax: 0.10.0
libtpu: 0.0.40
codegen_flags: <defaults>
</compile_context>

<pallas_src>
import functools

import jax
import jax.numpy as jnp
from jax import lax
from jax.experimental import pallas as pl
from jax.experimental.pallas import tpu as pltpu

LN_EPS = 1e-5                      # PyTorch nn.LayerNorm default eps
_VMEM_LIMIT = 32 * 1024 * 1024     # scoped-VMEM limit requested from Mosaic
_TILE_BUDGET = 24 * 1024 * 1024    # budget for double-buffered streaming tiles


# ----------------------------- small helpers --------------------------------
def _round_up(n, m):
    return ((n + m - 1) // m) * m


def _pick_block_rows(rows, hidden, n_stream_tiles, itemsize=4, cap=1024):
    """Largest row tile (multiple of 8) whose 2x-buffered streaming tiles fit
    the VMEM budget (conservative enough for v7x's 64 MiB VMEM)."""
    bytes_per_row = max(1, hidden * itemsize)
    max_rows = _TILE_BUDGET // (2 * n_stream_tiles * bytes_per_row)
    br = max(8, min(cap, (max_rows // 8) * 8))
    return min(br, _round_up(rows, 8))


def _i32(x):
    """Python int -> wrapped signed 32-bit value (for hash constants)."""
    x &= 0xFFFFFFFF
    return x - (1 << 32) if x >= (1 << 31) else x


_C1 = _i32(0x9E3779B1)
_C2 = _i32(0x85EBCA77)
_C3 = _i32(0xC2B2AE3D)
_F1 = _i32(0x85EBCA6B)
_F2 = _i32(0xC2B2AE35)


def _srl(k, n):
    """Logical right shift on int32: arithmetic shift + mask of sign bits."""
    return (k >> n) & ((1 << (32 - n)) - 1)


def _random_bits_i32(seed, row0, shape):
    """Deterministic per-element 32-bit hash of (seed, absolute row, col).

    Pure int32 arithmetic (mul/add/xor/shift) -> lowers on Mosaic and in
    interpret mode; the stream only depends on absolute indices, so the
    dropout mask is identical for any tiling / block_rows choice.
    """
    ri = lax.broadcasted_iota(jnp.int32, shape, 0) + row0
    ci = lax.broadcasted_iota(jnp.int32, shape, 1)
    k = ri * jnp.int32(_C1) + ci * jnp.int32(_C2) + seed * jnp.int32(_C3)
    k = k ^ _srl(k, 16)
    k = k * jnp.int32(_F1)
    k = k ^ _srl(k, 13)
    k = k * jnp.int32(_F2)
    k = k ^ _srl(k, 16)
    return k


def _keep_threshold_i32(rate):
    """Signed threshold t such that P(bits < t) == rate for uniform int32."""
    t = int(round(rate * 4294967296.0)) - 2147483648
    return max(-2147483648, min(2147483647, t))


def _apply_dropout(y, seed, row0, rate):
    """Inverted dropout on f32 `y` using the integer-domain keep test."""
    bits = _random_bits_i32(seed, row0, y.shape)
    keep = bits >= jnp.int32(_keep_threshold_i32(rate))
    return jnp.where(keep, y * (1.0 / (1.0 - rate)), 0.0)


def _layer_norm_rows(xf, gamma_f, beta_f):
    mean = jnp.mean(xf, axis=-1, keepdims=True)
    cent = xf - mean
    var = jnp.mean(cent * cent, axis=-1, keepdims=True)
    return cent * lax.rsqrt(var + LN_EPS) * gamma_f + beta_f


# ----------------------------- LayerNorm kernel -----------------------------
def _layernorm_kernel(x_ref, gamma_ref, beta_ref, o_ref):
    y = _layer_norm_rows(x_ref[...].astype(jnp.float32),
                         gamma_ref[...].astype(jnp.float32),
                         beta_ref[...].astype(jnp.float32))
    o_ref[...] = y.astype(o_ref.dtype)


def _layernorm(x2d, gamma, beta, *, block_rows):
    R, H = x2d.shape
    return pl.pallas_call(
        _layernorm_kernel,
        out_shape=jax.ShapeDtypeStruct((R, H), x2d.dtype),
        grid_spec=pltpu.PrefetchScalarGridSpec(
            num_scalar_prefetch=0,
            grid=(R // block_rows,),
            in_specs=[
                pl.BlockSpec((block_rows, H), lambda i: (i, 0)),
                pl.BlockSpec((1, H), lambda i: (0, 0)),
                pl.BlockSpec((1, H), lambda i: (0, 0)),
            ],
            out_specs=pl.BlockSpec((block_rows, H), lambda i: (i, 0)),
        ),
        compiler_params=pltpu.CompilerParams(
            dimension_semantics=("parallel",),
            vmem_limit_bytes=_VMEM_LIMIT),
    )(x2d, gamma.reshape(1, H), beta.reshape(1, H))


# ---------------------- dropout + residual-add kernel ------------------------
def _residual_dropout_kernel(seed_ref, x_ref, y_ref, o_ref, *, rate, block_rows):
    # NOTE: for bf16 activations on v6e/v7x the adds/selects could stay in
    # bf16; the demo is f32 so this is a no-op cast chain.
    y = y_ref[...].astype(jnp.float32)
    if rate > 0.0:
        row0 = pl.program_id(0) * block_rows
        y = _apply_dropout(y, seed_ref[0], row0, rate)
    o_ref[...] = (x_ref[...].astype(jnp.float32) + y).astype(o_ref.dtype)


def _dropout_residual(x2d, sub2d, *, rate, seed, block_rows):
    R, H = x2d.shape
    seed_arr = jnp.array([seed], dtype=jnp.int32)
    kernel = functools.partial(_residual_dropout_kernel,
                               rate=rate, block_rows=block_rows)
    return pl.pallas_call(
        kernel,
        out_shape=jax.ShapeDtypeStruct((R, H), x2d.dtype),
        grid_spec=pltpu.PrefetchScalarGridSpec(
            num_scalar_prefetch=1,
            grid=(R // block_rows,),
            in_specs=[
                pl.BlockSpec((block_rows, H), lambda i, s: (i, 0)),
                pl.BlockSpec((block_rows, H), lambda i, s: (i, 0)),
            ],
            out_specs=pl.BlockSpec((block_rows, H), lambda i, s: (i, 0)),
        ),
        compiler_params=pltpu.CompilerParams(
            dimension_semantics=("parallel",),
            vmem_limit_bytes=_VMEM_LIMIT),
    )(seed_arr, x2d, sub2d)


# ---------- fused LayerNorm -> Linear -> dropout -> residual kernel ----------
def _fused_linear_kernel(seed_ref, x_ref, gamma_ref, beta_ref, w_ref, b_ref,
                         o_ref, *, rate, block_rows):
    xf = x_ref[...].astype(jnp.float32)
    normed = _layer_norm_rows(xf,
                              gamma_ref[...].astype(jnp.float32),
                              beta_ref[...].astype(jnp.float32))
    y = jnp.dot(normed.astype(w_ref.dtype), w_ref[...],
                preferred_element_type=jnp.float32)
    y = y + b_ref[...].astype(jnp.float32)
    if rate > 0.0:
        row0 = pl.program_id(0) * block_rows
        y = _apply_dropout(y, seed_ref[0], row0, rate)
    o_ref[...] = (xf + y).astype(o_ref.dtype)


def residual_connection_linear(x, W, b, gamma, beta, *, dropout_rate, seed=0,
                               train=True, block_rows=None):
    """Fused path when the sublayer is Linear(H, H): one HBM pass."""
    B, S, H = x.shape
    R = B * S
    rate = float(dropout_rate) if train else 0.0
    assert rate < 1.0, "dropout_rate must be < 1"
    # TODO(synk): K-tile the fused matmul (reduction grid axis + f32 VMEM
    # accumulator) for hidden sizes where the full (H, H) weight won't fit VMEM.
    assert H * H * W.dtype.itemsize <= 8 * 1024 * 1024, "use K-tiled fused path"

    if block_rows is None:
        block_rows = _pick_block_rows(R, H, n_stream_tiles=2)
    Rp = _round_up(R, block_rows)
    x2d = x.reshape(R, H)
    x2d_p = jnp.pad(x2d, ((0, Rp - R), (0, 0))) if Rp != R else x2d

    seed_arr = jnp.array([seed], dtype=jnp.int32)
    kernel = functools.partial(_fused_linear_kernel,
                               rate=rate, block_rows=block_rows)
    out = pl.pallas_call(
        kernel,
        out_shape=jax.ShapeDtypeStruct((Rp, H), x.dtype),
        grid_spec=pltpu.PrefetchScalarGridSpec(
            num_scalar_prefetch=1,
            grid=(Rp // block_rows,),
            in_specs=[
                pl.BlockSpec((block_rows, H), lambda i, s: (i, 0)),
                pl.BlockSpec((1, H), lambda i, s: (0, 0)),
                pl.BlockSpec((1, H), lambda i, s: (0, 0)),
                pl.BlockSpec((H, H), lambda i, s: (0, 0)),
                pl.BlockSpec((1, H), lambda i, s: (0, 0)),
            ],
            out_specs=pl.BlockSpec((block_rows, H), lambda i, s: (i, 0)),
        ),
        compiler_params=pltpu.CompilerParams(
            dimension_semantics=("parallel",),
            vmem_limit_bytes=_VMEM_LIMIT),
    )(seed_arr, x2d_p, gamma.reshape(1, H), beta.reshape(1, H),
      W, b.reshape(1, H))
    return out[:R].reshape(B, S, H)


# ------------------------ generic (arbitrary sublayer) -----------------------
def residual_connection(x, sublayer, gamma, beta, *, dropout_rate, seed=0,
                        train=True, block_rows=None):
    """out = x + dropout(sublayer(layer_norm(x)))  for an arbitrary callable.

    The sublayer itself runs as plain JAX between the LayerNorm kernel and the
    fused dropout+residual kernel.
    """
    B, S, H = x.shape
    R = B * S
    rate = float(dropout_rate) if train else 0.0
    assert rate < 1.0, "dropout_rate must be < 1"

    if block_rows is None:
        block_rows = _pick_block_rows(R, H, n_stream_tiles=3)
    Rp = _round_up(R, block_rows)
    x2d = x.reshape(R, H)
    x2d_p = jnp.pad(x2d, ((0, Rp - R), (0, 0))) if Rp != R else x2d

    normed = _layernorm(x2d_p, gamma, beta, block_rows=block_rows)
    sub = sublayer(normed[:R].reshape(B, S, H)).reshape(R, H).astype(x.dtype)
    sub_p = jnp.pad(sub, ((0, Rp - R), (0, 0))) if Rp != R else sub

    out = _dropout_residual(x2d_p, sub_p, rate=rate, seed=seed,
                            block_rows=block_rows)
    return out[:R].reshape(B, S, H)


# ------------------------------- reference -----------------------------------
def _ref_forward_eval(x, W, b, gamma, beta):
    mean = jnp.mean(x, -1, keepdims=True)
    var = jnp.mean((x - mean) ** 2, -1, keepdims=True)
    normed = (x - mean) / jnp.sqrt(var + LN_EPS) * gamma + beta
    sub = normed @ W + b
    return x + sub                    # eval-mode dropout == identity


if __name__ == "__main__":
    B, S, H = 2, 8, 32                # size = hidden = 32
    dropout_rate = 0.1

    key = jax.random.PRNGKey(0)
    kx, kw, kb = jax.random.split(key, 3)
    x = jax.random.normal(kx, (B, S, H), dtype=jnp.float32)

    # nn.LayerNorm(size) params (default init: gamma=1, beta=0)
    gamma = jnp.ones((H,), dtype=jnp.float32)
    beta = jnp.zeros((H,), dtype=jnp.float32)

    # Example sublayer: deterministic Linear(H, H)
    W = jax.random.normal(kw, (H, H), dtype=jnp.float32) * 0.05
    b_lin = jax.random.normal(kb, (H,), dtype=jnp.float32) * 0.05
    sublayer = lambda t: t @ W + b_lin

    ref = _ref_forward_eval(x, W, b_lin, gamma, beta)

    # 1) eval mode — generic (LN kernel + JAX sublayer + residual kernel)
    out_eval = residual_connection(x, sublayer, gamma, beta,
                                   dropout_rate=dropout_rate, train=False)
    jax.block_until_ready(out_eval)
    assert jnp.allclose(out_eval, ref, atol=1e-5, rtol=1e-5), "generic eval mismatch"

    # 2) eval mode — fused single-kernel Linear path
    out_eval_f = residual_connection_linear(x, W, b_lin, gamma, beta,
                                            dropout_rate=dropout_rate, train=False)
    jax.block_until_ready(out_eval_f)
    assert jnp.allclose(out_eval_f, ref, atol=1e-4, rtol=1e-4), "fused eval mismatch"

    # 3) training mode — stochastic dropout; both paths share the same
    #    counter-based mask (absolute row/col + seed), so they must agree.
    out_train = residual_connection(x, sublayer, gamma, beta,
                                    dropout_rate=dropout_rate, train=True,
                                    seed=1234)
    out_train_f = residual_connection_linear(x, W, b_lin, gamma, beta,
                                             dropout_rate=dropout_rate,
                                             train=True, seed=1234)
    jax.block_until_ready((out_train, out_train_f))
    assert out_train.shape == x.shape and out_train.dtype == x.dtype
    assert bool(jnp.all(jnp.isfinite(out_train)))
    assert jnp.allclose(out_train, out_train_f, atol=1e-4, rtol=1e-4), \
        "train-mode mismatch between generic and fused paths"

    print("KERNEL_OK")
</pallas_src>

<mosaic_0001>
module attributes {stable_mosaic.version = 11 : i64} {
  func.func @_layernorm_kernel(%arg0: i32, %arg1: memref<16x32xf32, #tpu.memory_space<vmem>>, %arg2: memref<1x32xf32, #tpu.memory_space<vmem>>, %arg3: memref<1x32xf32, #tpu.memory_space<vmem>>, %arg4: memref<16x32xf32, #tpu.memory_space<vmem>>) attributes {dimension_semantics = [#tpu.dimension_semantics<parallel>], iteration_bounds = array<i64: 1>, scalar_prefetch = 0 : i64, scratch_operands = 0 : i64, tpu.core_type = #tpu.core_type<tc>, window_params = [{transform_indices = @transform_0, window_bounds = array<i64: 16, 32>}, {pipeline_mode = #tpu.pipeline_mode<synchronous>, transform_indices = @transform_1, window_bounds = array<i64: 1, 32>}, {pipeline_mode = #tpu.pipeline_mode<synchronous>, transform_indices = @transform_2, window_bounds = array<i64: 1, 32>}, {transform_indices = @transform_3, window_bounds = array<i64: 16, 32>}]} {
    %c0 = arith.constant 0 : index
    %c0_0 = arith.constant 0 : index
    %0 = vector.load %arg1[%c0, %c0_0] : memref<16x32xf32, #tpu.memory_space<vmem>>, vector<16x32xf32>
    %c0_1 = arith.constant 0 : index
    %c0_2 = arith.constant 0 : index
    %1 = vector.load %arg2[%c0_1, %c0_2] : memref<1x32xf32, #tpu.memory_space<vmem>>, vector<1x32xf32>
    %c0_3 = arith.constant 0 : index
    %c0_4 = arith.constant 0 : index
    %2 = vector.load %arg3[%c0_3, %c0_4] : memref<1x32xf32, #tpu.memory_space<vmem>>, vector<1x32xf32>
    %cst = arith.constant dense<0.000000e+00> : vector<16xf32>
    %3 = vector.multi_reduction <add>, %0, %cst [1] : vector<16x32xf32> to vector<16xf32>
    %4 = vector.shape_cast %3 : vector<16xf32> to vector<16x1xf32>
    %cst_5 = arith.constant 3.200000e+01 : f32
    %5 = vector.broadcast %cst_5 : f32 to vector<16x1xf32>
    %6 = arith.divf %4, %5 : vector<16x1xf32>
    %7 = vector.broadcast %6 : vector<16x1xf32> to vector<16x32xf32>
    %8 = arith.subf %0, %7 : vector<16x32xf32>
    %9 = arith.mulf %8, %8 : vector<16x32xf32>
    %cst_6 = arith.constant dense<0.000000e+00> : vector<16xf32>
    %10 = vector.multi_reduction <add>, %9, %cst_6 [1] : vector<16x32xf32> to vector<16xf32>
    %11 = vector.shape_cast %10 : vector<16xf32> to vector<16x1xf32>
    %cst_7 = arith.constant 3.200000e+01 : f32
    %12 = vector.broadcast %cst_7 : f32 to vector<16x1xf32>
    %13 = arith.divf %11, %12 : vector<16x1xf32>
    %cst_8 = arith.constant 9.99999974E-6 : f32
    %14 = vector.broadcast %cst_8 : f32 to vector<16x1xf32>
    %15 = arith.addf %13, %14 : vector<16x1xf32>
    %16 = math.rsqrt %15 : vector<16x1xf32>
    %17 = vector.broadcast %16 : vector<16x1xf32> to vector<16x32xf32>
    %18 = arith.mulf %8, %17 : vector<16x32xf32>
    %19 = vector.broadcast %1 : vector<1x32xf32> to vector<16x32xf32>
    %20 = arith.mulf %18, %19 : vector<16x32xf32>
    %21 = vector.broadcast %2 : vector<1x32xf32> to vector<16x32xf32>
    %22 = arith.addf %20, %21 : vector<16x32xf32>
    %c0_9 = arith.constant 0 : index
    %c0_10 = arith.constant 0 : index
    %23 = vector.load %arg4[%c0_9, %c0_10] : memref<16x32xf32, #tpu.memory_space<vmem>>, vector<16x32xf32>
    tpu.vector_store %arg4[%c0_9, %c0_10], %22 {strides = array<i32>} : memref<16x32xf32, #tpu.memory_space<vmem>>, vector<16x32xf32>,
    return
  }
  func.func @transform_0(%arg0: i32) -> (i32, i32) {
    %c0_i32 = arith.constant 0 : i32
    %c0_i32_0 = arith.constant 0 : i32
    return %arg0, %c0_i32 : i32, i32
  }
  func.func @transform_1(%arg0: i32) -> (i32, i32) {
    %c0_i32 = arith.constant 0 : i32
    %c0_i32_0 = arith.constant 0 : i32
    %c0_i32_1 = arith.constant 0 : i32
    return %c0_i32, %c0_i32_0 : i32, i32
  }
  func.func @transform_2(%arg0: i32) -> (i32, i32) {
    %c0_i32 = arith.constant 0 : i32
    %c0_i32_0 = arith.constant 0 : i32
    %c0_i32_1 = arith.constant 0 : i32
    return %c0_i32, %c0_i32_0 : i32, i32
  }
  func.func @transform_3(%arg0: i32) -> (i32, i32) {
    %c0_i32 = arith.constant 0 : i32
    %c0_i32_0 = arith.constant 0 : i32
    return %arg0, %c0_i32 : i32, i32
  }
}

</mosaic_0001>

<llo_original>
// kernel: tpu_custom_call.1
$region0: #{tpu_custom_call.1}
  #allocation0 [shape = 'u32[]', space=smem, size = 0x4, offset = 0x4, fixed_abs, tag = 'smem constant byte address 0x4 - core index']
  #allocation1 [shape = 'u32[144,128]{1,0:T(1,128)}', space=vmem, size = 0x12000, scoped, tag = 'internal scratch']
  %s0 = inlined_call_operand.hbm [shape: f32[16,32], index: 0, kind: input, shape index: {}]
  %s1 = inlined_call_operand.vmem [shape: f32[1,32], index: 1, kind: input, shape index: {}]
  %s2 = inlined_call_operand.vmem [shape: f32[1,32], index: 2, kind: input, shape index: {}]
  %s3 = inlined_call_operand.hbm [shape: f32[16,32], index: 3, kind: output, shape index: {}]
  %s4 = sld [smem:[#allocation0]]
  $region26: #{tpu_custom_call.1} parent=0
    _
  %s6 = ssub.s32 1, %s4
  %s7 = scalar_select 0, %s6, %s4
  $region1: #{tpu_custom_call.1} parent=0
    #allocation2 [shape = 'u8[8192]{0}', space=vmem, size = 0x2000, scoped, tag = 'input window, operand 0, single buffered']
    #allocation3 [shape = 's32[1]{0}', space=sflag, size = 0x4, scoped, tag = 'scoped memory for tpu_custom_call.1']
    #allocation4 [shape = 's32[1]{0}', space=sflag, size = 0x4, scoped, tag = 'scoped memory for tpu_custom_call.1']
    #allocation5 [shape = 'u8[8192]{0}', space=vmem, size = 0x2000, scoped, tag = 'output window, operand 0, single buffered']
    %8 = vsyncpa [#allocation3], 0
    %9 = vsyncpa [#allocation4], 0
    // Predicated region
    $region2: #{tpu_custom_call.1} parent=1 // pred_check
      _
    $region3: #{tpu_custom_call.1} parent=1 // pred_check_branch
      %11 = sbr.rel (0) target = $region5
    $region4: #{tpu_custom_call.1} parent=1 // pred_region
      %s13 = ssub.s32 256, 256
      %14 = vsyncadd [#allocation3], %s13
      %s15 = sshll.u32 [#allocation2], 4
      %s16 = int_to_ptr.vmem [resolvable:$true] %s15
      %21 = dma.hbm_to_vmem [thread:$0]  %s0, 256, %s16, [#allocation3], 128, 128, 8
    $region5: #{tpu_custom_call.1} parent=1 // pred_fallthru
      _
    // Predicated region
    $region6: #{tpu_custom_call.1} parent=1 // pred_check
      _
    $region7: #{tpu_custom_call.1} parent=1 // pred_check_branch
      %23 = sbr.rel (0) target = $region9
    $region8: #{tpu_custom_call.1} parent=1 // pred_region
      _
    $region9: #{tpu_custom_call.1} parent=1 // pred_fallthru
      _
    // Predicated region
    $region10: #{tpu_custom_call.1} parent=1 // pred_check
      _
    $region11: #{tpu_custom_call.1} parent=1 // pred_check_branch
      %25 = sbr.rel (0) target = $region13
    $region12: #{tpu_custom_call.1} parent=1 // pred_region
      _
    $region13: #{tpu_custom_call.1} parent=1 // pred_fallthru
      _
    // Predicated region
    $region14: #{tpu_custom_call.1} parent=1 // pred_check
      _
    $region15: #{tpu_custom_call.1} parent=1 // pred_check_branch
      %27 = sbr.rel (0) target = $region17
    $region16: #{tpu_custom_call.1} parent=1 // pred_region
      %28 = dma.done [#allocation3], 256
    $region17: #{tpu_custom_call.1} parent=1 // pred_fallthru
      _
    %v29 = vld [vmem:[#allocation2] sm:$0xff]
    %v30 = vld [vmem:[#allocation2 + $0x8] sm:$0xff]
    %v31 = vld [vmem:[%s1] sm:$0x1]
    %v32 = vld [vmem:[%s2] sm:$0x1]
    %vm33 = vcmask 261120
    %v34 = vsel %vm33, %v29, 0.0
    %35 = vadd.xlane.f32.xlu0 %v34
    %v36 = vpop.xlane.xlu0 %35
    %v37 = vsel %vm33, %v30, 0.0
    %38 = vadd.xlane.f32.xlu0 %v37
    %v39 = vpop.xlane.xlu0 %38
    %v40 = vrcp.pop 32.0
    %v41 = vmul.f32 %v36, %v40
    %v42 = vmul.f32 %v39, %v40
    %v43 = vsub.f32 %v29, %v41
    %v44 = vsub.f32 %v30, %v42
    %v45 = vmul.f32 %v43, %v43
    %v46 = vmul.f32 %v44, %v44
    %v47 = vsel %vm33, %v45, 0.0
    %48 = vadd.xlane.f32.xlu0 %v47
    %v49 = vpop.xlane.xlu0 %48
    %v50 = vsel %vm33, %v46, 0.0
    %51 = vadd.xlane.f32.xlu0 %v50
    %v52 = vpop.xlane.xlu0 %51
    %v53 = vmul.f32 %v49, %v40
    %v54 = vmul.f32 %v52, %v40
    %v55 = vadd.f32 %v53, 1e-05
    %v56 = vadd.f32 %v54, 1e-05
    %v57 = vrsqrt.pop %v55
    %v58 = vrsqrt.pop %v56
    %v59 = vmul.f32 %v43, %v57
    %v60 = vmul.f32 %v44, %v58
    %v62 = vlaneseq
    %v63 = vshrl.u32 %v62, 7
    %v64 = vsub.s32 0, %v63
    %v65 = vrot.slane %v31, %v64
    %v67 = vmul.f32 %v59, %v65
    %v68 = vmul.f32 %v60, %v65
    %v70 = vlaneseq
    %v71 = vshrl.u32 %v70, 7
    %v72 = vsub.s32 0, %v71
    %v73 = vrot.slane %v32, %v72
    %v75 = vadd.f32 %v67, %v73
    %v76 = vadd.f32 %v68, %v73
    %77 = vst.msk [vmem:[#allocation5] sm:$0xff] %vm33, %v75
    %78 = vst.msk [vmem:[#allocation5 + $0x8] sm:$0xff] %vm33, %v76
    // Predicated region
    $region18: #{tpu_custom_call.1} parent=1 // pred_check
      _
    $region19: #{tpu_custom_call.1} parent=1 // pred_check_branch
      %80 = sbr.rel (0) target = $region21
    $region20: #{tpu_custom_call.1} parent=1 // pred_region
      %s82 = ssub.s32 256, 256
      %83 = vsyncadd [#allocation4], %s82
      %s84 = sshll.u32 [#allocation5], 4
      %s85 = int_to_ptr.vmem [resolvable:$true] %s84
      %90 = dma.vmem_to_hbm [thread:$0]  %s85, 256, %s3, [#allocation4], 128, 128, 8
    $region21: #{tpu_custom_call.1} parent=1 // pred_fallthru
      _
    // Predicated region
    $region22: #{tpu_custom_call.1} parent=1 // pred_check
      _
    $region23: #{tpu_custom_call.1} parent=1 // pred_check_branch
      %92 = sbr.rel (0) target = $region25
    $region24: #{tpu_custom_call.1} parent=1 // pred_region
      %93 = dma.done [#allocation4], 256
    $region25: #{tpu_custom_call.1} parent=1 // pred_fallthru
      _
    %94 = vsyncpa [#allocation3], 1
    %95 = vsyncpa [#allocation4], 1

</llo_original>
